<compile_context>
chip_gen: v7x
topology: tpu7x:2x2x1
jax: 0.10.0
libtpu: 0.0.40
codegen_flags: <defaults>
</compile_context>

<pallas_src>
import jax
import jax.numpy as jnp
import numpy as np
from jax.experimental import pallas as pl
from jax.experimental.pallas import tpu as pltpu

EPS = 1e-5


def deepfm_kernel(xi_ref, e1_ref, e2f_ref, ssum_ref,
                  w1dT_ref, b1d_ref,
                  wde_ref, bde_ref, bnde_ref,
                  w0_ref, b0_ref, bn0_ref,
                  w1_ref, b1_ref, bn1_ref,
                  w2T_ref, b2_ref,
                  out_ref):
    xi = xi_ref[...]        # (B, C)    continuous features
    e1 = e1_ref[...]        # (B, F)    1st-order sparse embeddings (fused gather)
    e2f = e2f_ref[...]      # (B, F*D)  flattened 2nd-order sparse embeddings

    # ---- FM first-order: VPU multiply + lane reduction (no width-1 matmul) ----
    fm1 = (jnp.sum(xi * w1dT_ref[...], axis=1, keepdims=True)
           + b1d_ref[...]
           + jnp.sum(e1, axis=1, keepdims=True))                        # (B, 1)

    # ---- FM second-order: lane-dense via block-summation matmul ----
    # sum_e[b, d] = sum_f e2[b, f, d]  ==  e2f @ S  with S (F*D, D)
    sum_e = jnp.dot(e2f, ssum_ref[...],
                    preferred_element_type=jnp.float32)                 # (B, D)
    # sum_d sum_square == total sum of e2f^2 over the lane axis.
    fm2 = 0.5 * (jnp.sum(sum_e * sum_e, axis=1, keepdims=True)
                 - jnp.sum(e2f * e2f, axis=1, keepdims=True))           # (B, 1)

    # ---- training-mode BatchNorm1d (batch stats, biased var) + ReLU ----
    def bn_relu(x, p_ref):
        gamma = p_ref[0:1, :]
        beta = p_ref[1:2, :]
        mean = jnp.mean(x, axis=0, keepdims=True)
        cen = x - mean
        var = jnp.mean(cen * cen, axis=0, keepdims=True)
        return jnp.maximum(cen * jax.lax.rsqrt(var + EPS) * gamma + beta, 0.0)

    # ---- dense_embed: Linear + BN + ReLU ----
    de = jnp.dot(xi, wde_ref[...],
                 preferred_element_type=jnp.float32) + bde_ref[...]
    dnn_in = e2f + bn_relu(de, bnde_ref)                                # (B, F*D)

    # ---- DNN tower ----
    h = jnp.dot(dnn_in, w0_ref[...],
                preferred_element_type=jnp.float32) + b0_ref[...]
    h = bn_relu(h, bn0_ref)
    h = jnp.dot(h, w1_ref[...],
                preferred_element_type=jnp.float32) + b1_ref[...]
    h = bn_relu(h, bn1_ref)
    # final Linear(hidden, 1): VPU multiply + lane reduction
    logit = jnp.sum(h * w2T_ref[...], axis=1, keepdims=True) + b2_ref[...]

    out_ref[...] = jax.nn.sigmoid(fm1 + fm2 + logit)


def deepfm_forward(xi, xv, params):
    """xi: (B, n_cont) float32, xv: (B, n_cat) int32."""
    B = xi.shape[0]
    F = xv.shape[1]
    D = params["tab2_all"].shape[1]
    K = F * D

    # --- single fused embedding gathers (glue, data-dependent indexing) ---
    idx = xv + params["vocab_offsets"][None, :]               # (B, F)
    e1 = params["tab1_all"][idx, 0]                           # (B, F)
    e2f = params["tab2_all"][idx].reshape(B, K)               # (B, F*D)

    args = (xi, e1, e2f, params["ssum"],
            params["w1d"].T, params["b1d"],
            params["wde"], params["bde"], params["bnde"],
            params["w0"], params["b0"], params["bn0"],
            params["w1"], params["b1"], params["bn1"],
            params["w2"].T, params["b2"])

    vmem_spec = pl.BlockSpec(memory_space=pltpu.MemorySpace.VMEM)
    out = pl.pallas_call(
        deepfm_kernel,
        out_shape=jax.ShapeDtypeStruct((B, 1), jnp.float32),
        in_specs=[vmem_spec] * len(args),
        out_specs=vmem_spec,
    )(*args)
    return out


def reference_forward(xi, xv, params):
    """Pure-JAX reference replicating the PyTorch forward (train-mode BN)."""
    B = xi.shape[0]
    n_cat = xv.shape[1]
    D = params["tab2"][0].shape[1]
    e1 = jnp.stack([params["tab1"][i][xv[:, i], 0] for i in range(n_cat)], axis=1)
    e2 = jnp.stack([params["tab2"][i][xv[:, i]] for i in range(n_cat)], axis=1)

    fm1 = xi @ params["w1d"] + params["b1d"] + jnp.sum(e1, axis=1, keepdims=True)
    sum_e = jnp.sum(e2, axis=1)
    fm2 = 0.5 * jnp.sum(sum_e**2 - jnp.sum(e2**2, axis=1), axis=1, keepdims=True)

    def bn(x, p):
        m = jnp.mean(x, axis=0, keepdims=True)
        v = jnp.mean((x - m) ** 2, axis=0, keepdims=True)
        return (x - m) / jnp.sqrt(v + EPS) * p[0:1] + p[1:2]

    de = jax.nn.relu(bn(xi @ params["wde"] + params["bde"], params["bnde"]))
    dnn_in = e2.reshape(B, n_cat * D) + de
    h = jax.nn.relu(bn(dnn_in @ params["w0"] + params["b0"], params["bn0"]))
    h = jax.nn.relu(bn(h @ params["w1"] + params["b1"], params["bn1"]))
    logit = h @ params["w2"] + params["b2"]
    return jax.nn.sigmoid(fm1 + fm2 + logit)


def init_params(key, vocab_sizes, n_cont, embed_dim, hidden_dim):
    n_cat = len(vocab_sizes)
    K = n_cat * embed_dim
    keys = jax.random.split(key, 32)
    ki = iter(keys)

    def lin(k, fan_in, fan_out, scale=0.1):
        return jax.random.normal(k, (fan_in, fan_out), jnp.float32) * scale

    def bn_params(k, n):
        g = 1.0 + 0.1 * jax.random.normal(k, (1, n), jnp.float32)
        b = 0.1 * jax.random.normal(jax.random.fold_in(k, 1), (1, n), jnp.float32)
        return jnp.concatenate([g, b], axis=0)      # (2, n): [gamma; beta]

    tab1 = [jax.random.normal(next(ki), (v, 1), jnp.float32) for v in vocab_sizes]
    tab2 = [jax.random.normal(next(ki), (v, embed_dim), jnp.float32)
            for v in vocab_sizes]

    params = {
        "tab1": tab1,
        "tab2": tab2,
        # fused (offset-indexed) embedding tables — one gather each at forward
        "tab1_all": jnp.concatenate(tab1, axis=0),
        "tab2_all": jnp.concatenate(tab2, axis=0),
        "vocab_offsets": jnp.asarray(
            np.concatenate([[0], np.cumsum(vocab_sizes)[:-1]]), jnp.int32),
        # constant block-summation matrix S[k, d] = 1 iff k % embed_dim == d
        "ssum": jnp.asarray(np.tile(np.eye(embed_dim, dtype=np.float32),
                                    (n_cat, 1))),
        "w1d": lin(next(ki), n_cont, 1),
        "b1d": 0.01 * jax.random.normal(next(ki), (1, 1), jnp.float32),
        "wde": lin(next(ki), n_cont, K),
        "bde": 0.01 * jax.random.normal(next(ki), (1, K), jnp.float32),
        "bnde": bn_params(next(ki), K),
        "w0": lin(next(ki), K, hidden_dim[0]),
        "b0": 0.01 * jax.random.normal(next(ki), (1, hidden_dim[0]), jnp.float32),
        "bn0": bn_params(next(ki), hidden_dim[0]),
        "w1": lin(next(ki), hidden_dim[0], hidden_dim[1]),
        "b1": 0.01 * jax.random.normal(next(ki), (1, hidden_dim[1]), jnp.float32),
        "bn1": bn_params(next(ki), hidden_dim[1]),
        "w2": lin(next(ki), hidden_dim[1], 1),
        "b2": 0.01 * jax.random.normal(next(ki), (1, 1), jnp.float32),
    }
    return params


if __name__ == "__main__":
    B = 8
    n_cont = 4
    vocab_sizes = [20, 30, 40, 50, 25, 35]
    n_cat = len(vocab_sizes)
    embed_dim = 8
    hidden_dim = [32, 32]

    key = jax.random.PRNGKey(0)
    k_param, k_xi, k_xv = jax.random.split(key, 3)

    params = init_params(k_param, vocab_sizes, n_cont, embed_dim, hidden_dim)
    xi = jax.random.normal(k_xi, (B, n_cont), jnp.float32)
    xv = jnp.stack(
        [jax.random.randint(jax.random.fold_in(k_xv, i), (B,), 0, vocab_sizes[i])
         for i in range(n_cat)], axis=1).astype(jnp.int32)

    out = deepfm_forward(xi, xv, params)
    out = jax.block_until_ready(out)

    ref = jax.block_until_ready(reference_forward(xi, xv, params))
    np.testing.assert_allclose(np.asarray(out), np.asarray(ref),
                               rtol=1e-4, atol=1e-4)
    assert out.shape == (B, 1)
    print("KERNEL_OK")
</pallas_src>

<mosaic_0001>
module attributes {stable_mosaic.version = 11 : i64} {
  func.func @deepfm_kernel(%arg0: memref<8x4xf32, #tpu.memory_space<vmem>>, %arg1: memref<8x6xf32, #tpu.memory_space<vmem>>, %arg2: memref<8x48xf32, #tpu.memory_space<vmem>>, %arg3: memref<48x8xf32, #tpu.memory_space<vmem>>, %arg4: memref<1x4xf32, #tpu.memory_space<vmem>>, %arg5: memref<1x1xf32, #tpu.memory_space<vmem>>, %arg6: memref<4x48xf32, #tpu.memory_space<vmem>>, %arg7: memref<1x48xf32, #tpu.memory_space<vmem>>, %arg8: memref<2x48xf32, #tpu.memory_space<vmem>>, %arg9: memref<48x32xf32, #tpu.memory_space<vmem>>, %arg10: memref<1x32xf32, #tpu.memory_space<vmem>>, %arg11: memref<2x32xf32, #tpu.memory_space<vmem>>, %arg12: memref<32x32xf32, #tpu.memory_space<vmem>>, %arg13: memref<1x32xf32, #tpu.memory_space<vmem>>, %arg14: memref<2x32xf32, #tpu.memory_space<vmem>>, %arg15: memref<1x32xf32, #tpu.memory_space<vmem>>, %arg16: memref<1x1xf32, #tpu.memory_space<vmem>>, %arg17: memref<8x1xf32, #tpu.memory_space<vmem>>) attributes {dimension_semantics = [], scalar_prefetch = 0 : i64, scratch_operands = 0 : i64, tpu.core_type = #tpu.core_type<tc>} {
    %c0 = arith.constant 0 : index
    %c0_0 = arith.constant 0 : index
    %0 = vector.load %arg0[%c0, %c0_0] : memref<8x4xf32, #tpu.memory_space<vmem>>, vector<8x4xf32>
    %c0_1 = arith.constant 0 : index
    %c0_2 = arith.constant 0 : index
    %1 = vector.load %arg1[%c0_1, %c0_2] : memref<8x6xf32, #tpu.memory_space<vmem>>, vector<8x6xf32>
    %c0_3 = arith.constant 0 : index
    %c0_4 = arith.constant 0 : index
    %2 = vector.load %arg2[%c0_3, %c0_4] : memref<8x48xf32, #tpu.memory_space<vmem>>, vector<8x48xf32>
    %c0_5 = arith.constant 0 : index
    %c0_6 = arith.constant 0 : index
    %3 = vector.load %arg4[%c0_5, %c0_6] : memref<1x4xf32, #tpu.memory_space<vmem>>, vector<1x4xf32>
    %4 = vector.broadcast %3 : vector<1x4xf32> to vector<8x4xf32>
    %5 = arith.mulf %0, %4 : vector<8x4xf32>
    %cst = arith.constant dense<0.000000e+00> : vector<8xf32>
    %6 = vector.multi_reduction <add>, %5, %cst [1] : vector<8x4xf32> to vector<8xf32>
    %7 = vector.shape_cast %6 : vector<8xf32> to vector<8x1xf32>
    %c0_7 = arith.constant 0 : index
    %c0_8 = arith.constant 0 : index
    %8 = vector.load %arg5[%c0_7, %c0_8] : memref<1x1xf32, #tpu.memory_space<vmem>>, vector<1x1xf32>
    %9 = vector.broadcast %8 : vector<1x1xf32> to vector<8x1xf32>
    %10 = arith.addf %7, %9 : vector<8x1xf32>
    %cst_9 = arith.constant dense<0.000000e+00> : vector<8xf32>
    %11 = vector.multi_reduction <add>, %1, %cst_9 [1] : vector<8x6xf32> to vector<8xf32>
    %12 = vector.shape_cast %11 : vector<8xf32> to vector<8x1xf32>
    %13 = arith.addf %10, %12 : vector<8x1xf32>
    %c0_10 = arith.constant 0 : index
    %c0_11 = arith.constant 0 : index
    %14 = vector.load %arg3[%c0_10, %c0_11] : memref<48x8xf32, #tpu.memory_space<vmem>>, vector<48x8xf32>
    %cst_12 = arith.constant dense<0.000000e+00> : vector<8x8xf32>
    %15 = tpu.matmul %2, %14, %cst_12 {dimension_numbers = #tpu.dot_dimension_numbers<[1], [0], [0], [1], [0, 0, 1, 1], [], []>} : vector<8x48xf32>, vector<48x8xf32>, vector<8x8xf32> -> vector<8x8xf32>
    %16 = arith.mulf %15, %15 : vector<8x8xf32>
    %cst_13 = arith.constant dense<0.000000e+00> : vector<8xf32>
    %17 = vector.multi_reduction <add>, %16, %cst_13 [1] : vector<8x8xf32> to vector<8xf32>
    %18 = vector.shape_cast %17 : vector<8xf32> to vector<8x1xf32>
    %19 = arith.mulf %2, %2 : vector<8x48xf32>
    %cst_14 = arith.constant dense<0.000000e+00> : vector<8xf32>
    %20 = vector.multi_reduction <add>, %19, %cst_14 [1] : vector<8x48xf32> to vector<8xf32>
    %21 = vector.shape_cast %20 : vector<8xf32> to vector<8x1xf32>
    %22 = arith.subf %18, %21 : vector<8x1xf32>
    %cst_15 = arith.constant 5.000000e-01 : f32
    %23 = vector.broadcast %cst_15 : f32 to vector<8x1xf32>
    %24 = arith.mulf %23, %22 : vector<8x1xf32>
    %c0_16 = arith.constant 0 : index
    %c0_17 = arith.constant 0 : index
    %25 = vector.load %arg6[%c0_16, %c0_17] : memref<4x48xf32, #tpu.memory_space<vmem>>, vector<4x48xf32>
    %cst_18 = arith.constant dense<0.000000e+00> : vector<8x48xf32>
    %26 = tpu.matmul %0, %25, %cst_18 {dimension_numbers = #tpu.dot_dimension_numbers<[1], [0], [0], [1], [0, 0, 1, 1], [], []>} : vector<8x4xf32>, vector<4x48xf32>, vector<8x48xf32> -> vector<8x48xf32>
    %c0_19 = arith.constant 0 : index
    %c0_20 = arith.constant 0 : index
    %27 = vector.load %arg7[%c0_19, %c0_20] : memref<1x48xf32, #tpu.memory_space<vmem>>, vector<1x48xf32>
    %28 = vector.broadcast %27 : vector<1x48xf32> to vector<8x48xf32>
    %29 = arith.addf %26, %28 : vector<8x48xf32>
    %c0_21 = arith.constant 0 : index
    %c0_22 = arith.constant 0 : index
    %30 = vector.load %arg8[%c0_21, %c0_22] : memref<2x48xf32, #tpu.memory_space<vmem>>, vector<1x48xf32>
    %c1 = arith.constant 1 : index
    %c0_23 = arith.constant 0 : index
    %31 = vector.load %arg8[%c1, %c0_23] : memref<2x48xf32, #tpu.memory_space<vmem>>, vector<1x48xf32>
    %cst_24 = arith.constant dense<0.000000e+00> : vector<48xf32>
    %32 = vector.multi_reduction <add>, %29, %cst_24 [0] : vector<8x48xf32> to vector<48xf32>
    %33 = vector.shape_cast %32 : vector<48xf32> to vector<1x48xf32>
    %cst_25 = arith.constant 8.000000e+00 : f32
    %34 = vector.broadcast %cst_25 : f32 to vector<1x48xf32>
    %35 = arith.divf %33, %34 : vector<1x48xf32>
    %36 = vector.broadcast %35 : vector<1x48xf32> to vector<8x48xf32>
    %37 = arith.subf %29, %36 : vector<8x48xf32>
    %38 = arith.mulf %37, %37 : vector<8x48xf32>
    %cst_26 = arith.constant dense<0.000000e+00> : vector<48xf32>
    %39 = vector.multi_reduction <add>, %38, %cst_26 [0] : vector<8x48xf32> to vector<48xf32>
    %40 = vector.shape_cast %39 : vector<48xf32> to vector<1x48xf32>
    %cst_27 = arith.constant 8.000000e+00 : f32
    %41 = vector.broadcast %cst_27 : f32 to vector<1x48xf32>
    %42 = arith.divf %40, %41 : vector<1x48xf32>
    %cst_28 = arith.constant 9.99999974E-6 : f32
    %43 = vector.broadcast %cst_28 : f32 to vector<1x48xf32>
    %44 = arith.addf %42, %43 : vector<1x48xf32>
    %45 = math.rsqrt %44 : vector<1x48xf32>
    %46 = vector.broadcast %45 : vector<1x48xf32> to vector<8x48xf32>
    %47 = arith.mulf %37, %46 : vector<8x48xf32>
    %48 = vector.broadcast %30 : vector<1x48xf32> to vector<8x48xf32>
    %49 = arith.mulf %47, %48 : vector<8x48xf32>
    %50 = vector.broadcast %31 : vector<1x48xf32> to vector<8x48xf32>
    %51 = arith.addf %49, %50 : vector<8x48xf32>
    %cst_29 = arith.constant 0.000000e+00 : f32
    %52 = vector.broadcast %cst_29 : f32 to vector<8x48xf32>
    %53 = arith.maximumf %51, %52 : vector<8x48xf32>
    %54 = arith.addf %2, %53 : vector<8x48xf32>
    %c0_30 = arith.constant 0 : index
    %c0_31 = arith.constant 0 : index
    %55 = vector.load %arg9[%c0_30, %c0_31] : memref<48x32xf32, #tpu.memory_space<vmem>>, vector<48x32xf32>
    %cst_32 = arith.constant dense<0.000000e+00> : vector<8x32xf32>
    %56 = tpu.matmul %54, %55, %cst_32 {dimension_numbers = #tpu.dot_dimension_numbers<[1], [0], [0], [1], [0, 0, 1, 1], [], []>} : vector<8x48xf32>, vector<48x32xf32>, vector<8x32xf32> -> vector<8x32xf32>
    %c0_33 = arith.constant 0 : index
    %c0_34 = arith.constant 0 : index
    %57 = vector.load %arg10[%c0_33, %c0_34] : memref<1x32xf32, #tpu.memory_space<vmem>>, vector<1x32xf32>
    %58 = vector.broadcast %57 : vector<1x32xf32> to vector<8x32xf32>
    %59 = arith.addf %56, %58 : vector<8x32xf32>
    %c0_35 = arith.constant 0 : index
    %c0_36 = arith.constant 0 : index
    %60 = vector.load %arg11[%c0_35, %c0_36] : memref<2x32xf32, #tpu.memory_space<vmem>>, vector<1x32xf32>
    %c1_37 = arith.constant 1 : index
    %c0_38 = arith.constant 0 : index
    %61 = vector.load %arg11[%c1_37, %c0_38] : memref<2x32xf32, #tpu.memory_space<vmem>>, vector<1x32xf32>
    %cst_39 = arith.constant dense<0.000000e+00> : vector<32xf32>
    %62 = vector.multi_reduction <add>, %59, %cst_39 [0] : vector<8x32xf32> to vector<32xf32>
    %63 = vector.shape_cast %62 : vector<32xf32> to vector<1x32xf32>
    %cst_40 = arith.constant 8.000000e+00 : f32
    %64 = vector.broadcast %cst_40 : f32 to vector<1x32xf32>
    %65 = arith.divf %63, %64 : vector<1x32xf32>
    %66 = vector.broadcast %65 : vector<1x32xf32> to vector<8x32xf32>
    %67 = arith.subf %59, %66 : vector<8x32xf32>
    %68 = arith.mulf %67, %67 : vector<8x32xf32>
    %cst_41 = arith.constant dense<0.000000e+00> : vector<32xf32>
    %69 = vector.multi_reduction <add>, %68, %cst_41 [0] : vector<8x32xf32> to vector<32xf32>
    %70 = vector.shape_cast %69 : vector<32xf32> to vector<1x32xf32>
    %cst_42 = arith.constant 8.000000e+00 : f32
    %71 = vector.broadcast %cst_42 : f32 to vector<1x32xf32>
    %72 = arith.divf %70, %71 : vector<1x32xf32>
    %cst_43 = arith.constant 9.99999974E-6 : f32
    %73 = vector.broadcast %cst_43 : f32 to vector<1x32xf32>
    %74 = arith.addf %72, %73 : vector<1x32xf32>
    %75 = math.rsqrt %74 : vector<1x32xf32>
    %76 = vector.broadcast %75 : vector<1x32xf32> to vector<8x32xf32>
    %77 = arith.mulf %67, %76 : vector<8x32xf32>
    %78 = vector.broadcast %60 : vector<1x32xf32> to vector<8x32xf32>
    %79 = arith.mulf %77, %78 : vector<8x32xf32>
    %80 = vector.broadcast %61 : vector<1x32xf32> to vector<8x32xf32>
    %81 = arith.addf %79, %80 : vector<8x32xf32>
    %cst_44 = arith.constant 0.000000e+00 : f32
    %82 = vector.broadcast %cst_44 : f32 to vector<8x32xf32>
    %83 = arith.maximumf %81, %82 : vector<8x32xf32>
    %c0_45 = arith.constant 0 : index
    %c0_46 = arith.constant 0 : index
    %84 = vector.load %arg12[%c0_45, %c0_46] : memref<32x32xf32, #tpu.memory_space<vmem>>, vector<32x32xf32>
    %cst_47 = arith.constant dense<0.000000e+00> : vector<8x32xf32>
    %85 = tpu.matmul %83, %84, %cst_47 {dimension_numbers = #tpu.dot_dimension_numbers<[1], [0], [0], [1], [0, 0, 1, 1], [], []>} : vector<8x32xf32>, vector<32x32xf32>, vector<8x32xf32> -> vector<8x32xf32>
    %c0_48 = arith.constant 0 : index
    %c0_49 = arith.constant 0 : index
    %86 = vector.load %arg13[%c0_48, %c0_49] : memref<1x32xf32, #tpu.memory_space<vmem>>, vector<1x32xf32>
    %87 = vector.broadcast %86 : vector<1x32xf32> to vector<8x32xf32>
    %88 = arith.addf %85, %87 : vector<8x32xf32>
    %c0_50 = arith.constant 0 : index
    %c0_51 = arith.constant 0 : index
    %89 = vector.load %arg14[%c0_50, %c0_51] : memref<2x32xf32, #tpu.memory_space<vmem>>, vector<1x32xf32>
    %c1_52 = arith.constant 1 : index
    %c0_53 = arith.constant 0 : index
    %90 = vector.load %arg14[%c1_52, %c0_53] : memref<2x32xf32, #tpu.memory_space<vmem>>, vector<1x32xf32>
    %cst_54 = arith.constant dense<0.000000e+00> : vector<32xf32>
    %91 = vector.multi_reduction <add>, %88, %cst_54 [0] : vector<8x32xf32> to vector<32xf32>
    %92 = vector.shape_cast %91 : vector<32xf32> to vector<1x32xf32>
    %cst_55 = arith.constant 8.000000e+00 : f32
    %93 = vector.broadcast %cst_55 : f32 to vector<1x32xf32>
    %94 = arith.divf %92, %93 : vector<1x32xf32>
    %95 = vector.broadcast %94 : vector<1x32xf32> to vector<8x32xf32>
    %96 = arith.subf %88, %95 : vector<8x32xf32>
    %97 = arith.mulf %96, %96 : vector<8x32xf32>
    %cst_56 = arith.constant dense<0.000000e+00> : vector<32xf32>
    %98 = vector.multi_reduction <add>, %97, %cst_56 [0] : vector<8x32xf32> to vector<32xf32>
    %99 = vector.shape_cast %98 : vector<32xf32> to vector<1x32xf32>
    %cst_57 = arith.constant 8.000000e+00 : f32
    %100 = vector.broadcast %cst_57 : f32 to vector<1x32xf32>
    %101 = arith.divf %99, %100 : vector<1x32xf32>
    %cst_58 = arith.constant 9.99999974E-6 : f32
    %102 = vector.broadcast %cst_58 : f32 to vector<1x32xf32>
    %103 = arith.addf %101, %102 : vector<1x32xf32>
    %104 = math.rsqrt %103 : vector<1x32xf32>
    %105 = vector.broadcast %104 : vector<1x32xf32> to vector<8x32xf32>
    %106 = arith.mulf %96, %105 : vector<8x32xf32>
    %107 = vector.broadcast %89 : vector<1x32xf32> to vector<8x32xf32>
    %108 = arith.mulf %106, %107 : vector<8x32xf32>
    %109 = vector.broadcast %90 : vector<1x32xf32> to vector<8x32xf32>
    %110 = arith.addf %108, %109 : vector<8x32xf32>
    %cst_59 = arith.constant 0.000000e+00 : f32
    %111 = vector.broadcast %cst_59 : f32 to vector<8x32xf32>
    %112 = arith.maximumf %110, %111 : vector<8x32xf32>
    %c0_60 = arith.constant 0 : index
    %c0_61 = arith.constant 0 : index
    %113 = vector.load %arg15[%c0_60, %c0_61] : memref<1x32xf32, #tpu.memory_space<vmem>>, vector<1x32xf32>
    %114 = vector.broadcast %113 : vector<1x32xf32> to vector<8x32xf32>
    %115 = arith.mulf %112, %114 : vector<8x32xf32>
    %cst_62 = arith.constant dense<0.000000e+00> : vector<8xf32>
    %116 = vector.multi_reduction <add>, %115, %cst_62 [1] : vector<8x32xf32> to vector<8xf32>
    %117 = vector.shape_cast %116 : vector<8xf32> to vector<8x1xf32>
    %c0_63 = arith.constant 0 : index
    %c0_64 = arith.constant 0 : index
    %118 = vector.load %arg16[%c0_63, %c0_64] : memref<1x1xf32, #tpu.memory_space<vmem>>, vector<1x1xf32>
    %119 = vector.broadcast %118 : vector<1x1xf32> to vector<8x1xf32>
    %120 = arith.addf %117, %119 : vector<8x1xf32>
    %121 = arith.addf %13, %24 : vector<8x1xf32>
    %122 = arith.addf %121, %120 : vector<8x1xf32>
    %123 = arith.negf %122 : vector<8x1xf32>
    %124 = math.exp %123 : vector<8x1xf32>
    %cst_65 = arith.constant 1.000000e+00 : f32
    %125 = vector.broadcast %cst_65 : f32 to vector<8x1xf32>
    %126 = arith.addf %125, %124 : vector<8x1xf32>
    %127 = arith.divf %125, %126 : vector<8x1xf32>
    %c0_66 = arith.constant 0 : index
    %c0_67 = arith.constant 0 : index
    %128 = vector.load %arg17[%c0_66, %c0_67] : memref<8x1xf32, #tpu.memory_space<vmem>>, vector<8x1xf32>
    tpu.vector_store %arg17[%c0_66, %c0_67], %127 {strides = array<i32>} : memref<8x1xf32, #tpu.memory_space<vmem>>, vector<8x1xf32>,
    return
  }
}

</mosaic_0001>

<llo_original>
// kernel: tpu_custom_call.1
$region0: #{tpu_custom_call.1}
  #allocation0 [shape = 'u32[]', space=smem, size = 0x4, offset = 0x4, fixed_abs, tag = 'smem constant byte address 0x4 - core index']
  #allocation1 [shape = 'u32[144,128]{1,0:T(1,128)}', space=vmem, size = 0x12000, scoped, tag = 'internal scratch']
  #allocation2 [shape = 'f32[1,1]{1,0:T(1,128)S(1)}', space=vmem, size = 0x200, scoped, tag = 'scoped memory for tpu_custom_call.1']
  #allocation3 [shape = 'f32[1,1]{1,0:T(1,128)S(1)}', space=vmem, size = 0x200, scoped, tag = 'scoped memory for tpu_custom_call.1']
  %s0 = inlined_call_operand.vmem [shape: f32[8,4], index: 0, kind: input, shape index: {}]
  %s1 = inlined_call_operand.vmem [shape: f32[8,6], index: 1, kind: input, shape index: {}]
  %s2 = inlined_call_operand.vmem [shape: f32[8,48], index: 2, kind: input, shape index: {}]
  %s3 = inlined_call_operand.vmem [shape: f32[48,8], index: 3, kind: input, shape index: {}]
  %s4 = inlined_call_operand.vmem [shape: f32[1,4], index: 4, kind: input, shape index: {}]
  %s5 = inlined_call_operand.<no memory space> [shape: f32[1,1], index: 5, kind: input, shape index: {}]
  %s6 = inlined_call_operand.vmem [shape: f32[4,48], index: 6, kind: input, shape index: {}]
  %s7 = inlined_call_operand.vmem [shape: f32[1,48], index: 7, kind: input, shape index: {}]
  %s8 = inlined_call_operand.vmem [shape: f32[2,48], index: 8, kind: input, shape index: {}]
  %s9 = inlined_call_operand.vmem [shape: f32[48,32], index: 9, kind: input, shape index: {}]
  %s10 = inlined_call_operand.vmem [shape: f32[1,32], index: 10, kind: input, shape index: {}]
  %s11 = inlined_call_operand.vmem [shape: f32[2,32], index: 11, kind: input, shape index: {}]
  %s12 = inlined_call_operand.vmem [shape: f32[32,32], index: 12, kind: input, shape index: {}]
  %s13 = inlined_call_operand.vmem [shape: f32[1,32], index: 13, kind: input, shape index: {}]
  %s14 = inlined_call_operand.vmem [shape: f32[2,32], index: 14, kind: input, shape index: {}]
  %s15 = inlined_call_operand.vmem [shape: f32[1,32], index: 15, kind: input, shape index: {}]
  %s16 = inlined_call_operand.<no memory space> [shape: f32[1,1], index: 16, kind: input, shape index: {}]
  %s17 = inlined_call_operand.vmem [shape: f32[8,1], index: 17, kind: output, shape index: {}]
  %s18 = sld [smem:[#allocation0]]
  $region78: #{tpu_custom_call.1} parent=0
    _
  %s20 = ssub.s32 1, %s18
  %s21 = scalar_select 0, %s20, %s18
  %v22 = vstv %s5
  %23 = vst [vmem:[#allocation2] sm:$0x1] %v22
  %v24 = vstv %s16
  %25 = vst [vmem:[#allocation3] sm:$0x1] %v24
  // Predicated region
  $region2: #{tpu_custom_call.1} parent=0 // pred_check
    _
  $region3: #{tpu_custom_call.1} parent=0 // pred_check_branch
    %27 = sbr.rel (0) target = $region5
  $region4: #{tpu_custom_call.1} parent=0 // pred_region
    _
  $region5: #{tpu_custom_call.1} parent=0 // pred_fallthru
    _
  // Predicated region
  $region6: #{tpu_custom_call.1} parent=0 // pred_check
    _
  $region7: #{tpu_custom_call.1} parent=0 // pred_check_branch
    %29 = sbr.rel (0) target = $region9
  $region8: #{tpu_custom_call.1} parent=0 // pred_region
    _
  $region9: #{tpu_custom_call.1} parent=0 // pred_fallthru
    _
  // Predicated region
  $region10: #{tpu_custom_call.1} parent=0 // pred_check
    _
  $region11: #{tpu_custom_call.1} parent=0 // pred_check_branch
    %31 = sbr.rel (0) target = $region13
  $region12: #{tpu_custom_call.1} parent=0 // pred_region
    _
  $region13: #{tpu_custom_call.1} parent=0 // pred_fallthru
    _
  // Predicated region
  $region14: #{tpu_custom_call.1} parent=0 // pred_check
    _
  $region15: #{tpu_custom_call.1} parent=0 // pred_check_branch
    %33 = sbr.rel (0) target = $region17
  $region16: #{tpu_custom_call.1} parent=0 // pred_region
    _
  $region17: #{tpu_custom_call.1} parent=0 // pred_fallthru
    _
  // Predicated region
  $region18: #{tpu_custom_call.1} parent=0 // pred_check
    _
  $region19: #{tpu_custom_call.1} parent=0 // pred_check_branch
    %35 = sbr.rel (0) target = $region21
  $region20: #{tpu_custom_call.1} parent=0 // pred_region
    _
  $region21: #{tpu_custom_call.1} parent=0 // pred_fallthru
    _
  // Predicated region
  $region22: #{tpu_custom_call.1} parent=0 // pred_check
    _
  $region23: #{tpu_custom_call.1} parent=0 // pred_check_branch
    %37 = sbr.rel (0) target = $region25
  $region24: #{tpu_custom_call.1} parent=0 // pred_region
    _
  $region25: #{tpu_custom_call.1} parent=0 // pred_fallthru
    _
  // Predicated region
  $region26: #{tpu_custom_call.1} parent=0 // pred_check
    _
  $region27: #{tpu_custom_call.1} parent=0 // pred_check_branch
    %39 = sbr.rel (0) target = $region29
  $region28: #{tpu_custom_call.1} parent=0 // pred_region
    _
  $region29: #{tpu_custom_call.1} parent=0 // pred_fallthru
    _
  // Predicated region
  $region30: #{tpu_custom_call.1} parent=0 // pred_check
    _
  $region31: #{tpu_custom_call.1} parent=0 // pred_check_branch
    %41 = sbr.rel (0) target = $region33
  $region32: #{tpu_custom_call.1} parent=0 // pred_region
    _
  $region33: #{tpu_custom_call.1} parent=0 // pred_fallthru
    _
  // Predicated region
  $region34: #{tpu_custom_call.1} parent=0 // pred_check
    _
  $region35: #{tpu_custom_call.1} parent=0 // pred_check_branch
    %43 = sbr.rel (0) target = $region37
  $region36: #{tpu_custom_call.1} parent=0 // pred_region
    _
  $region37: #{tpu_custom_call.1} parent=0 // pred_fallthru
    _
  // Predicated region
  $region38: #{tpu_custom_call.1} parent=0 // pred_check
    _
  $region39: #{tpu_custom_call.1} parent=0 // pred_check_branch
    %45 = sbr.rel (0) target = $region41
  $region40: #{tpu_custom_call.1} parent=0 // pred_region
    _
  $region41: #{tpu_custom_call.1} parent=0 // pred_fallthru
    _
  // Predicated region
  $region42: #{tpu_custom_call.1} parent=0 // pred_check
    _
  $region43: #{tpu_custom_call.1} parent=0 // pred_check_branch
    %47 = sbr.rel (0) target = $region45
  $region44: #{tpu_custom_call.1} parent=0 // pred_region
    _
  $region45: #{tpu_custom_call.1} parent=0 // pred_fallthru
    _
  // Predicated region
  $region46: #{tpu_custom_call.1} parent=0 // pred_check
    _
  $region47: #{tpu_custom_call.1} parent=0 // pred_check_branch
    %49 = sbr.rel (0) target = $region49
  $region48: #{tpu_custom_call.1} parent=0 // pred_region
    _
  $region49: #{tpu_custom_call.1} parent=0 // pred_fallthru
    _
  // Predicated region
  $region50: #{tpu_custom_call.1} parent=0 // pred_check
    _
  $region51: #{tpu_custom_call.1} parent=0 // pred_check_branch
    %51 = sbr.rel (0) target = $region53
  $region52: #{tpu_custom_call.1} parent=0 // pred_region
    _
  $region53: #{tpu_custom_call.1} parent=0 // pred_fallthru
    _
  // Predicated region
  $region54: #{tpu_custom_call.1} parent=0 // pred_check
    _
  $region55: #{tpu_custom_call.1} parent=0 // pred_check_branch
    %53 = sbr.rel (0) target = $region57
  $region56: #{tpu_custom_call.1} parent=0 // pred_region
    _
  $region57: #{tpu_custom_call.1} parent=0 // pred_fallthru
    _
  // Predicated region
  $region58: #{tpu_custom_call.1} parent=0 // pred_check
    _
  $region59: #{tpu_custom_call.1} parent=0 // pred_check_branch
    %55 = sbr.rel (0) target = $region61
  $region60: #{tpu_custom_call.1} parent=0 // pred_region
    _
  $region61: #{tpu_custom_call.1} parent=0 // pred_fallthru
    _
  // Predicated region
  $region62: #{tpu_custom_call.1} parent=0 // pred_check
    _
  $region63: #{tpu_custom_call.1} parent=0 // pred_check_branch
    %57 = sbr.rel (0) target = $region65
  $region64: #{tpu_custom_call.1} parent=0 // pred_region
    _
  $region65: #{tpu_custom_call.1} parent=0 // pred_fallthru
    _
  // Predicated region
  $region66: #{tpu_custom_call.1} parent=0 // pred_check
    _
  $region67: #{tpu_custom_call.1} parent=0 // pred_check_branch
    %59 = sbr.rel (0) target = $region69
  $region68: #{tpu_custom_call.1} parent=0 // pred_region
    _
  $region69: #{tpu_custom_call.1} parent=0 // pred_fallthru
    _
  %v60 = vld [vmem:[%s0] sm:$0xff]
  %v61 = vld [vmem:[%s1] sm:$0xff]
  %v62 = vld [vmem:[%s2] sm:$0xff]
  %v63 = vld [vmem:[%s4] sm:$0x1]
  %v65 = vlaneseq
  %v66 = vshrl.u32 %v65, 7
  %v67 = vsub.s32 0, %v66
  %v68 = vrot.slane %v63, %v67
  %v70 = vmul.f32 %v60, %v68
  %vm71 = vcmask 31744
  %v72 = vsel %vm71, %v70, 0.0
  %73 = vadd.xlane.f32.xlu0 %v72
  %v74 = vpop.xlane.xlu0 %73
  %v75 = vld [vmem:[#allocation2] sm:$0x1]
  %v77 = vlaneseq
  %v78 = vshrl.u32 %v77, 7
  %v79 = vsub.s32 0, %v78
  %v80 = vrot.slane %v75, %v79
  %v82 = vadd.f32 %v74, %v80
  %vm83 = vcmask 48128
  %v84 = vsel %vm83, %v61, 0.0
  %85 = vadd.xlane.f32.xlu0 %v84
  %v86 = vpop.xlane.xlu0 %85
  %v87 = vadd.f32 %v82, %v86
  %v88 = vld [vmem:[%s3] sm:$0xff]
  %v89 = vld [vmem:[%s3 + $0x8] sm:$0xff]
  %v90 = vld [vmem:[%s3 + $0x10] sm:$0xff]
  %v91 = vld [vmem:[%s3 + $0x18] sm:$0xff]
  %v92 = vld [vmem:[%s3 + $0x20] sm:$0xff]
  %v93 = vld [vmem:[%s3 + $0x28] sm:$0xff]
  %vm94 = vcmask 392192
  %v96 = vsel %vm94, %v62, 0
  %98 = vmatprep.subr.mxu0 0.0
  %99 = vmatpush1.msra.mxu0 %v88
  %100 = vmatprep.subr.mxu0 0.0
  %101 = vmatpush1.msra.mxu0 %v89
  %102 = vmatprep.subr.mxu0 0.0
  %103 = vmatpush1.msra.mxu0 %v90
  %104 = vmatprep.subr.mxu0 0.0
  %105 = vmatpush1.msra.mxu0 %v91
  %106 = vmatprep.subr.mxu0 0.0
  %107 = vmatpush1.msra.mxu0 %v92
  %108 = vmatprep.subr.mxu0 0.0
  %109 = vmatpush1.msra.mxu0 %v93
  %110 = vmatprep.subr.mxu0 0.0
  %111 = vmatpush1.msra.mxu0 0.0
  %112 = vmatprep.subr.mxu0 0.0
  %113 = vmatpush1.msra.mxu0 0.0
  %114 = vmatprep.subr.mxu0 0.0
  %115 = vmatpush1.msra.mxu0 0.0
  %116 = vmatprep.subr.mxu0 0.0
  %117 = vmatpush1.msra.mxu0 0.0
  %118 = vmatprep.subr.mxu0 0.0
  %119 = vmatpush1.msra.mxu0 0.0
  %120 = vmatprep.subr.mxu0 0.0
  %121 = vmatpush1.msra.mxu0 0.0
  %122 = vmatprep.subr.mxu0 0.0
  %123 = vmatpush1.msra.mxu0 0.0
  %124 = vmatprep.subr.mxu0 0.0
  %125 = vmatpush1.msra.mxu0 0.0
  %126 = vmatprep.subr.mxu0 0.0
  %127 = vmatpush1.msra.mxu0 0.0
  %128 = vmatprep.subr.mxu0 0.0
  %129 = vmatpush1.msra.mxu0 0.0
  %130 = vmatprep.subr.mxu0 0.0
  %131 = vmatpush1.msra.mxu0 0.0
  %132 = vmatprep.subr.mxu0 0.0
  %133 = vmatpush1.msra.mxu0 0.0
  %134 = vmatprep.subr.mxu0 0.0
  %135 = vmatpush1.msra.mxu0 0.0
  %136 = vmatprep.subr.mxu0 0.0
  %137 = vmatpush1.msra.mxu0 0.0
  %138 = vmatprep.subr.mxu0 0.0
  %139 = vmatpush1.msra.mxu0 0.0
  %140 = vmatprep.subr.mxu0 0.0
  %141 = vmatpush1.msra.mxu0 0.0
  %142 = vmatprep.subr.mxu0 0.0
  %143 = vmatpush1.msra.mxu0 0.0
  %144 = vmatprep.subr.mxu0 0.0
  %145 = vmatpush1.msra.mxu0 0.0
  %146 = vmatprep.subr.mxu0 0.0
  %147 = vmatpush1.msra.mxu0 0.0
  %148 = vmatprep.subr.mxu0 0.0
  %149 = vmatpush1.msra.mxu0 0.0
  %150 = vmatprep.subr.mxu0 0.0
  %151 = vmatpush1.msra.mxu0 0.0
  %152 = vmatprep.subr.mxu0 0.0
  %153 = vmatpush1.msra.mxu0 0.0
  %154 = vmatprep.subr.mxu0 0.0
  %155 = vmatpush1.msra.mxu0 0.0
  %156 = vmatprep.subr.mxu0 0.0
  %157 = vmatpush1.msra.mxu0 0.0
  %158 = vmatprep.subr.mxu0 0.0
  %159 = vmatpush1.msra.mxu0 0.0
  %160 = vmatprep.subr.mxu0 0.0
  %161 = vmatpush1.msra.mxu0 0.0
  %162 = vmatprep.mubr.f32.mxu0 0.0
  %163 = vmatmul.mubr.f32.gmra.mrb[0].mxu0 %v96
  %v164 = vpop.f32.mrb[0].mxu0
  %v165 = vadd.f32 0.0, %v164
  %v166 = vpop.f32.mrb[0].mxu0
  %167 = vdwg.mxu0
  %v168 = vmul.f32 %v165, %v165
  %vm169 = vcmask 64512
  %v170 = vsel %vm169, %v168, 0.0
  %171 = vadd.xlane.f32.xlu0 %v170
  %v172 = vpop.xlane.xlu0 %171
  %v173 = vmul.f32 %v62, %v62
  %v174 = vsel %vm94, %v173, 0.0
  %175 = vadd.xlane.f32.xlu0 %v174
  %v176 = vpop.xlane.xlu0 %175
  %v177 = vsub.f32 %v172, %v176
  %v178 = vmul.f32 %v177, 0.5
  %v179 = vld [vmem:[%s6] sm:$0xf]
  %v180 = vld [vmem:[%s7] sm:$0x1]
  %v182 = vlaneseq
  %v183 = vshrl.u32 %v182, 7
  %v184 = vsub.s32 0, %v183
  %v185 = vrot.slane %v180, %v184
  %v188 = vsel %vm71, %v60, 0
  %vm190 = vcmask 1043456
  %v192 = vsel %vm190, %v179, 0
  %194 = vmatprep.subr.mxu0 0.0
  %195 = vmatpush1.msra.mxu0 %v192
  %196 = vmatprep.subr.mxu0 0.0
  %197 = vmatpush1.msra.mxu0 0.0
  %198 = vmatprep.subr.mxu0 0.0
  %199 = vmatpush1.msra.mxu0 0.0
  %200 = vmatprep.subr.mxu0 0.0
  %201 = vmatpush1.msra.mxu0 0.0
  %202 = vmatprep.subr.mxu0 0.0
  %203 = vmatpush1.msra.mxu0 0.0
  %204 = vmatprep.subr.mxu0 0.0
  %205 = vmatpush1.msra.mxu0 0.0
  %206 = vmatprep.subr.mxu0 0.0
  %207 = vmatpush1.msra.mxu0 0.0
  %208 = vmatprep.subr.mxu0 0.0
  %209 = vmatpush1.msra.mxu0 0.0
  %210 = vmatprep.subr.mxu0 0.0
  %211 = vmatpush1.msra.mxu0 0.0
  %212 = vmatprep.subr.mxu0 0.0
  %213 = vmatpush1.msra.mxu0 0.0
  %214 = vmatprep.subr.mxu0 0.0
  %215 = vmatpush1.msra.mxu0 0.0
  %216 = vmatprep.subr.mxu0 0.0
  %217 = vmatpush1.msra.mxu0 0.0
  %218 = vmatprep.subr.mxu0 0.0
  %219 = vmatpush1.msra.mxu0 0.0
  %220 = vmatprep.subr.mxu0 0.0
  %221 = vmatpush1.msra.mxu0 0.0
  %222 = vmatprep.subr.mxu0 0.0
  %223 = vmatpush1.msra.mxu0 0.0
  %224 = vmatprep.subr.mxu0 0.0
  %225 = vmatpush1.msra.mxu0 0.0
  %226 = vmatprep.subr.mxu0 0.0
  %227 = vmatpush1.msra.mxu0 0.0
  %228 = vmatprep.subr.mxu0 0.0
  %229 = vmatpush1.msra.mxu0 0.0
  %230 = vmatprep.subr.mxu0 0.0
  %231 = vmatpush1.msra.mxu0 0.0
  %232 = vmatprep.subr.mxu0 0.0
  %233 = vmatpush1.msra.mxu0 0.0
  %234 = vmatprep.subr.mxu0 0.0
  %235 = vmatpush1.msra.mxu0 0.0
  %236 = vmatprep.subr.mxu0 0.0
  %237 = vmatpush1.msra.mxu0 0.0
  %238 = vmatprep.subr.mxu0 0.0
  %239 = vmatpush1.msra.mxu0 0.0
  %240 = vmatprep.subr.mxu0 0.0
  %241 = vmatpush1.msra.mxu0 0.0
  %242 = vmatprep.subr.mxu0 0.0
  %243 = vmatpush1.msra.mxu0 0.0
  %244 = vmatprep.subr.mxu0 0.0
  %245 = vmatpush1.msra.mxu0 0.0
  %246 = vmatprep.subr.mxu0 0.0
  %247 = vmatpush1.msra.mxu0 0.0
  %248 = vmatprep.subr.mxu0 0.0
  %249 = vmatpush1.msra.mxu0 0.0
  %250 = vmatprep.subr.mxu0 0.0
  %251 = vmatpush1.msra.mxu0 0.0
  %252 = vmatprep.subr.mxu0 0.0
  %253 = vmatpush1.msra.mxu0 0.0
  %254 = vmatprep.subr.mxu0 0.0
  %255 = vmatpush1.msra.mxu0 0.0
  %256 = vmatprep.subr.mxu0 0.0
  %257 = vmatpush1.msra.mxu0 0.0
  %258 = vmatprep.mubr.f32.mxu0 0.0
  %259 = vmatmul.mubr.f32.gmra.mrb[0].mxu0 %v188
  %v260 = vpop.f32.mrb[0].mxu0
  %v261 = vadd.f32 %v185, %v260
  %v262 = vpop.f32.mrb[0].mxu0
  %263 = vdwg.mxu0
  %v264 = vld [vmem:[%s8] sm:$0x1]
  %v265 = vld [vmem:[%s8 + $0x1] sm:$0x1]
  %v266 = vsel %vm94, %v261, 0.0
  %v267 = vrot.slane %v266, 4
  %v268 = vadd.f32 %v266, %v267
  %v269 = vrot.slane %v268, 2
  %v270 = vadd.f32 %v268, %v269
  %v271 = vrot.slane %v270, 1
  %v272 = vadd.f32 %v270, %v271
  %v273 = vrcp.pop 8.0
  %v274 = vmul.f32 %v272, %v273
  %v275 = vsub.f32 %v261, %v274
  %v276 = vmul.f32 %v275, %v275
  %v277 = vsel %vm94, %v276, 0.0
  %v278 = vrot.slane %v277, 4
  %v279 = vadd.f32 %v277, %v278
  %v280 = vrot.slane %v279, 2
  %v281 = vadd.f32 %v279, %v280
  %v282 = vrot.slane %v281, 1
  %v283 = vadd.f32 %v281, %v282
  %v284 = vmul.f32 %v283, %v273
  %v285 = vadd.f32 %v284, 1e-05
  %v286 = vrsqrt.pop %v285
  %v287 = vmul.f32 %v275, %v286
  %v288 = vlaneseq
  %v289 = vshrl.u32 %v288, 7
  %v290 = vsub.s32 0, %v289
  %v291 = vrot.slane %v264, %v290
  %v292 = vmul.f32 %v287, %v291
  %v293 = vlaneseq
  %v294 = vshrl.u32 %v293, 7
  %v295 = vsub.s32 0, %v294
  %v296 = vrot.slane %v265, %v295
  %v297 = vadd.f32 %v292, %v296
  %v298 = vmax.f32 %v297, 0.0
  %v299 = vadd.f32 %v62, %v298
  %v300 = vld [vmem:[%s9] sm:$0xff]
  %v301 = vld [vmem:[%s9 + $0x8] sm:$0xff]
  %v302 = vld [vmem:[%s9 + $0x10] sm:$0xff]
  %v303 = vld [vmem:[%s9 + $0x18] sm:$0xff]
  %v304 = vld [vmem:[%s9 + $0x20] sm:$0xff]
  %v305 = vld [vmem:[%s9 + $0x28] sm:$0xff]
  %v306 = vld [vmem:[%s10] sm:$0x1]
  %v308 = vlaneseq
  %v309 = vshrl.u32 %v308, 7
  %v310 = vsub.s32 0, %v309
  %v311 = vrot.slane %v306, %v310
  %v314 = vsel %vm94, %v299, 0
  %316 = vmatprep.subr.mxu0 0.0
  %317 = vmatpush1.msra.mxu0 %v300
  %318 = vmatprep.subr.mxu0 0.0
  %319 = vmatpush1.msra.mxu0 %v301
  %320 = vmatprep.subr.mxu0 0.0
  %321 = vmatpush1.msra.mxu0 %v302
  %322 = vmatprep.subr.mxu0 0.0
  %323 = vmatpush1.msra.mxu0 %v303
  %324 = vmatprep.subr.mxu0 0.0
  %325 = vmatpush1.msra.mxu0 %v304
  %326 = vmatprep.subr.mxu0 0.0
  %327 = vmatpush1.msra.mxu0 %v305
  %328 = vmatprep.subr.mxu0 0.0
  %329 = vmatpush1.msra.mxu0 0.0
  %330 = vmatprep.subr.mxu0 0.0
  %331 = vmatpush1.msra.mxu0 0.0
  %332 = vmatprep.subr.mxu0 0.0
  %333 = vmatpush1.msra.mxu0 0.0
  %334 = vmatprep.subr.mxu0 0.0
  %335 = vmatpush1.msra.mxu0 0.0
  %336 = vmatprep.subr.mxu0 0.0
  %337 = vmatpush1.msra.mxu0 0.0
  %338 = vmatprep.subr.mxu0 0.0
  %339 = vmatpush1.msra.mxu0 0.0
  %340 = vmatprep.subr.mxu0 0.0
  %341 = vmatpush1.msra.mxu0 0.0
  %342 = vmatprep.subr.mxu0 0.0
  %343 = vmatpush1.msra.mxu0 0.0
  %344 = vmatprep.subr.mxu0 0.0
  %345 = vmatpush1.msra.mxu0 0.0
  %346 = vmatprep.subr.mxu0 0.0
  %347 = vmatpush1.msra.mxu0 0.0
  %348 = vmatprep.subr.mxu0 0.0
  %349 = vmatpush1.msra.mxu0 0.0
  %350 = vmatprep.subr.mxu0 0.0
  %351 = vmatpush1.msra.mxu0 0.0
  %352 = vmatprep.subr.mxu0 0.0
  %353 = vmatpush1.msra.mxu0 0.0
  %354 = vmatprep.subr.mxu0 0.0
  %355 = vmatpush1.msra.mxu0 0.0
  %356 = vmatprep.subr.mxu0 0.0
  %357 = vmatpush1.msra.mxu0 0.0
  %358 = vmatprep.subr.mxu0 0.0
  %359 = vmatpush1.msra.mxu0 0.0
  %360 = vmatprep.subr.mxu0 0.0
  %361 = vmatpush1.msra.mxu0 0.0
  %362 = vmatprep.subr.mxu0 0.0
  %363 = vmatpush1.msra.mxu0 0.0
  %364 = vmatprep.subr.mxu0 0.0
  %365 = vmatpush1.msra.mxu0 0.0
  %366 = vmatprep.subr.mxu0 0.0
  %367 = vmatpush1.msra.mxu0 0.0
  %368 = vmatprep.subr.mxu0 0.0
  %369 = vmatpush1.msra.mxu0 0.0
  %370 = vmatprep.subr.mxu0 0.0
  %371 = vmatpush1.msra.mxu0 0.0
  %372 = vmatprep.subr.mxu0 0.0
  %373 = vmatpush1.msra.mxu0 0.0
  %374 = vmatprep.subr.mxu0 0.0
  %375 = vmatpush1.msra.mxu0 0.0
  %376 = vmatprep.subr.mxu0 0.0
  %377 = vmatpush1.msra.mxu0 0.0
  %378 = vmatprep.subr.mxu0 0.0
  %379 = vmatpush1.msra.mxu0 0.0
  %380 = vmatprep.mubr.f32.mxu0 0.0
  %381 = vmatmul.mubr.f32.gmra.mrb[0].mxu0 %v314
  %v382 = vpop.f32.mrb[0].mxu0
  %v383 = vadd.f32 %v311, %v382
  %v384 = vpop.f32.mrb[0].mxu0
  %385 = vdwg.mxu0
  %v386 = vld [vmem:[%s11] sm:$0x1]
  %v387 = vld [vmem:[%s11 + $0x1] sm:$0x1]
  %vm388 = vcmask 261120
  %v389 = vsel %vm388, %v383, 0.0
  %v390 = vrot.slane %v389, 4
  %v391 = vadd.f32 %v389, %v390
  %v392 = vrot.slane %v391, 2
  %v393 = vadd.f32 %v391, %v392
  %v394 = vrot.slane %v393, 1
  %v395 = vadd.f32 %v393, %v394
  %v396 = vmul.f32 %v395, %v273
  %v397 = vsub.f32 %v383, %v396
  %v398 = vmul.f32 %v397, %v397
  %v399 = vsel %vm388, %v398, 0.0
  %v400 = vrot.slane %v399, 4
  %v401 = vadd.f32 %v399, %v400
  %v402 = vrot.slane %v401, 2
  %v403 = vadd.f32 %v401, %v402
  %v404 = vrot.slane %v403, 1
  %v405 = vadd.f32 %v403, %v404
  %v406 = vmul.f32 %v405, %v273
  %v407 = vadd.f32 %v406, 1e-05
  %v408 = vrsqrt.pop %v407
  %v409 = vmul.f32 %v397, %v408
  %v410 = vlaneseq
  %v411 = vshrl.u32 %v410, 7
  %v412 = vsub.s32 0, %v411
  %v413 = vrot.slane %v386, %v412
  %v414 = vmul.f32 %v409, %v413
  %v415 = vlaneseq
  %v416 = vshrl.u32 %v415, 7
  %v417 = vsub.s32 0, %v416
  %v418 = vrot.slane %v387, %v417
  %v419 = vadd.f32 %v414, %v418
  %v420 = vmax.f32 %v419, 0.0
  %v421 = vld [vmem:[%s12] sm:$0xff]
  %v422 = vld [vmem:[%s12 + $0x8] sm:$0xff]
  %v423 = vld [vmem:[%s12 + $0x10] sm:$0xff]
  %v424 = vld [vmem:[%s12 + $0x18] sm:$0xff]
  %v425 = vld [vmem:[%s13] sm:$0x1]
  %v427 = vlaneseq
  %v428 = vshrl.u32 %v427, 7
  %v429 = vsub.s32 0, %v428
  %v430 = vrot.slane %v425, %v429
  %v433 = vsel %vm388, %v420, 0
  %435 = vmatprep.subr.mxu0 0.0
  %436 = vmatpush1.msra.mxu0 %v421
  %437 = vmatprep.subr.mxu0 0.0
  %438 = vmatpush1.msra.mxu0 %v422
  %439 = vmatprep.subr.mxu0 0.0
  %440 = vmatpush1.msra.mxu0 %v423
  %441 = vmatprep.subr.mxu0 0.0
  %442 = vmatpush1.msra.mxu0 %v424
  %443 = vmatprep.subr.mxu0 0.0
  %444 = vmatpush1.msra.mxu0 0.0
  %445 = vmatprep.subr.mxu0 0.0
  %446 = vmatpush1.msra.mxu0 0.0
  %447 = vmatprep.subr.mxu0 0.0
  %448 = vmatpush1.msra.mxu0 0.0
  %449 = vmatprep.subr.mxu0 0.0
  %450 = vmatpush1.msra.mxu0 0.0
  %451 = vmatprep.subr.mxu0 0.0
  %452 = vmatpush1.msra.mxu0 0.0
  %453 = vmatprep.subr.mxu0 0.0
  %454 = vmatpush1.msra.mxu0 0.0
  %455 = vmatprep.subr.mxu0 0.0
  %456 = vmatpush1.msra.mxu0 0.0
  %457 = vmatprep.subr.mxu0 0.0
  %458 = vmatpush1.msra.mxu0 0.0
  %459 = vmatprep.subr.mxu0 0.0
  %460 = vmatpush1.msra.mxu0 0.0
  %461 = vmatprep.subr.mxu0 0.0
  %462 = vmatpush1.msra.mxu0 0.0
  %463 = vmatprep.subr.mxu0 0.0
  %464 = vmatpush1.msra.mxu0 0.0
  %465 = vmatprep.subr.mxu0 0.0
  %466 = vmatpush1.msra.mxu0 0.0
  %467 = vmatprep.subr.mxu0 0.0
  %468 = vmatpush1.msra.mxu0 0.0
  %469 = vmatprep.subr.mxu0 0.0
  %470 = vmatpush1.msra.mxu0 0.0
  %471 = vmatprep.subr.mxu0 0.0
  %472 = vmatpush1.msra.mxu0 0.0
  %473 = vmatprep.subr.mxu0 0.0
  %474 = vmatpush1.msra.mxu0 0.0
  %475 = vmatprep.subr.mxu0 0.0
  %476 = vmatpush1.msra.mxu0 0.0
  %477 = vmatprep.subr.mxu0 0.0
  %478 = vmatpush1.msra.mxu0 0.0
  %479 = vmatprep.subr.mxu0 0.0
  %480 = vmatpush1.msra.mxu0 0.0
  %481 = vmatprep.subr.mxu0 0.0
  %482 = vmatpush1.msra.mxu0 0.0
  %483 = vmatprep.subr.mxu0 0.0
  %484 = vmatpush1.msra.mxu0 0.0
  %485 = vmatprep.subr.mxu0 0.0
  %486 = vmatpush1.msra.mxu0 0.0
  %487 = vmatprep.subr.mxu0 0.0
  %488 = vmatpush1.msra.mxu0 0.0
  %489 = vmatprep.subr.mxu0 0.0
  %490 = vmatpush1.msra.mxu0 0.0
  %491 = vmatprep.subr.mxu0 0.0
  %492 = vmatpush1.msra.mxu0 0.0
  %493 = vmatprep.subr.mxu0 0.0
  %494 = vmatpush1.msra.mxu0 0.0
  %495 = vmatprep.subr.mxu0 0.0
  %496 = vmatpush1.msra.mxu0 0.0
  %497 = vmatprep.subr.mxu0 0.0
  %498 = vmatpush1.msra.mxu0 0.0
  %499 = vmatprep.mubr.f32.mxu0 0.0
  %500 = vmatmul.mubr.f32.gmra.mrb[0].mxu0 %v433
  %v501 = vpop.f32.mrb[0].mxu0
  %v502 = vadd.f32 %v430, %v501
  %v503 = vpop.f32.mrb[0].mxu0
  %504 = vdwg.mxu0
  %v505 = vld [vmem:[%s14] sm:$0x1]
  %v506 = vld [vmem:[%s14 + $0x1] sm:$0x1]
  %v507 = vsel %vm388, %v502, 0.0
  %v508 = vrot.slane %v507, 4
  %v509 = vadd.f32 %v507, %v508
  %v510 = vrot.slane %v509, 2
  %v511 = vadd.f32 %v509, %v510
  %v512 = vrot.slane %v511, 1
  %v513 = vadd.f32 %v511, %v512
  %v514 = vmul.f32 %v513, %v273
  %v515 = vsub.f32 %v502, %v514
  %v516 = vmul.f32 %v515, %v515
  %v517 = vsel %vm388, %v516, 0.0
  %v518 = vrot.slane %v517, 4
  %v519 = vadd.f32 %v517, %v518
  %v520 = vrot.slane %v519, 2
  %v521 = vadd.f32 %v519, %v520
  %v522 = vrot.slane %v521, 1
  %v523 = vadd.f32 %v521, %v522
  %v524 = vmul.f32 %v523, %v273
  %v525 = vadd.f32 %v524, 1e-05
  %v526 = vrsqrt.pop %v525
  %v527 = vmul.f32 %v515, %v526
  %v528 = vlaneseq
  %v529 = vshrl.u32 %v528, 7
  %v530 = vsub.s32 0, %v529
  %v531 = vrot.slane %v505, %v530
  %v532 = vmul.f32 %v527, %v531
  %v533 = vlaneseq
  %v534 = vshrl.u32 %v533, 7
  %v535 = vsub.s32 0, %v534
  %v536 = vrot.slane %v506, %v535
  %v537 = vadd.f32 %v532, %v536
  %v538 = vmax.f32 %v537, 0.0
  %v539 = vld [vmem:[%s15] sm:$0x1]
  %v541 = vlaneseq
  %v542 = vshrl.u32 %v541, 7
  %v543 = vsub.s32 0, %v542
  %v544 = vrot.slane %v539, %v543
  %v546 = vmul.f32 %v538, %v544
  %v547 = vsel %vm388, %v546, 0.0
  %548 = vadd.xlane.f32.xlu0 %v547
  %v549 = vpop.xlane.xlu0 %548
  %v550 = vld [vmem:[#allocation3] sm:$0x1]
  %v552 = vlaneseq
  %v553 = vshrl.u32 %v552, 7
  %v554 = vsub.s32 0, %v553
  %v555 = vrot.slane %v550, %v554
  %v557 = vadd.f32 %v549, %v555
  %v558 = vadd.f32 %v87, %v178
  %v559 = vadd.f32 %v558, %v557
  %v560 = vxor.u32 %v559, 2147483648
  %v561 = vmul.f32 %v560, 1.442695
  %v562 = vpow.pop %v561
  %v563 = vadd.f32 %v562, 1.0
  %v564 = vrcp.pop %v563
  %v565 = vmul.f32 1.0, %v564
  %vm566 = vcmask 7168
  %567 = vst.msk [vmem:[%s17] sm:$0xff] %vm566, %v565
  // Predicated region
  $region70: #{tpu_custom_call.1} parent=0 // pred_check
    _
  $region71: #{tpu_custom_call.1} parent=0 // pred_check_branch
    %569 = sbr.rel (0) target = $region73
  $region72: #{tpu_custom_call.1} parent=0 // pred_region
    _
  $region73: #{tpu_custom_call.1} parent=0 // pred_fallthru
    _
  // Predicated region
  $region74: #{tpu_custom_call.1} parent=0 // pred_check
    _
  $region75: #{tpu_custom_call.1} parent=0 // pred_check_branch
    %571 = sbr.rel (0) target = $region77
  $region76: #{tpu_custom_call.1} parent=0 // pred_region
    _
  $region77: #{tpu_custom_call.1} parent=0 // pred_fallthru
    _

</llo_original>
